<compile_context>
chip_gen: v7x
topology: tpu7x:2x2x1
jax: 0.10.0
libtpu: 0.0.40
codegen_flags: <defaults>
</compile_context>

<pallas_src>
import jax
import jax.numpy as jnp
from jax.experimental import pallas as pl
from jax.experimental.pallas import tpu as pltpu


def _round_up(x, m):
    return ((x + m - 1) // m) * m


def _cdiv(a, b):
    return -(-a // b)


def _anniris_kernel(x_ref, w_in_ref, b_in_ref, w_h_ref, b_h_ref,
                    w_out_ref, b_out_ref, o_ref):
    # x arrives f32 (only 4 cols, negligible bytes); cast so every matmul is a
    # bf16 x bf16 MXU op with f32 accumulation.
    xb = x_ref[...].astype(jnp.bfloat16)

    # Input layer + ReLU (bias-add / ReLU stay f32).
    h = jnp.dot(xb, w_in_ref[...],
                preferred_element_type=jnp.float32) + b_in_ref[...]
    h = jnp.maximum(h, 0.0).astype(jnp.bfloat16)

    num_layers = w_h_ref.shape[0]

    def hidden_layer(i, h):
        y = jnp.dot(h, w_h_ref[i],
                    preferred_element_type=jnp.float32) + b_h_ref[i]
        return jnp.maximum(y, 0.0).astype(jnp.bfloat16)

    if num_layers >= 8:
        # Deep stacks: rolled loop bounds live ranges / register pressure.
        h = jax.lax.fori_loop(0, num_layers, hidden_layer, h)
    else:
        for i in range(num_layers):
            h = hidden_layer(i, h)

    # Output layer (no activation); lane-dense (128-padded) f32 store.
    o_ref[...] = (jnp.dot(h, w_out_ref[...],
                          preferred_element_type=jnp.float32)
                  + b_out_ref[...]).astype(o_ref.dtype)


def prepare_params(params):
    """One-time prep: zero-pad to lane-dense widths and cast weights to bf16.

    Input params (f32, already (in, out) layout):
      w_in  (4, U),    b_in  (1, U)
      w_h   (L, U, U), b_h   (L, 1, U)
      w_out (U, 3),    b_out (1, 3)
    Zero padding is semantics-preserving: padded hidden units stay 0 through
    ReLU and padded output columns are sliced off in the wrapper.
    """
    F, U = params["w_in"].shape
    L = params["w_h"].shape[0]
    O = params["w_out"].shape[1]
    U_p = _round_up(U, 128)
    O_p = _round_up(O, 128)

    def pad_to(a, shape):
        pads = [(0, t - s) for s, t in zip(a.shape, shape)]
        return jnp.pad(a, pads)

    return {
        "w_in": pad_to(params["w_in"], (F, U_p)).astype(jnp.bfloat16),
        "b_in": pad_to(params["b_in"], (1, U_p)).astype(jnp.float32),
        "w_h": pad_to(params["w_h"], (L, U_p, U_p)).astype(jnp.bfloat16),
        "b_h": pad_to(params["b_h"], (L, 1, U_p)).astype(jnp.float32),
        "w_out": pad_to(params["w_out"], (U_p, O_p)).astype(jnp.bfloat16),
        "b_out": pad_to(params["b_out"], (1, O_p)).astype(jnp.float32),
        "num_out": O,
    }


def anniris_forward(x, prepared, *, block_b=None):
    """ANNiris forward pass. x: (B, 4) f32, prepared: output of prepare_params.

    Returns (B, 3) float32.
    """
    B, F = x.shape
    w_in, b_in = prepared["w_in"], prepared["b_in"]
    w_h, b_h = prepared["w_h"], prepared["b_h"]
    w_out, b_out = prepared["w_out"], prepared["b_out"]
    U_p = w_in.shape[1]
    L = w_h.shape[0]
    O_p = w_out.shape[1]
    O = prepared["num_out"]

    # ---- batch tiling -------------------------------------------------------
    if block_b is None:
        if B < 256:
            # Whole batch in one invocation (a (256,4) f32 x block is 4 KiB).
            block_b = _round_up(max(B, 8), 8)
        else:
            # >=2 grid steps and an EVEN step count so v7x's two TensorCores
            # split the "parallel" batch axis evenly; tiles capped at ~1024
            # rows (keeps DMAs large on v5e/v6e, amortizes ~0.35us/step).
            steps = max(2, 2 * _cdiv(_cdiv(B, 1024), 2))
            block_b = _round_up(_cdiv(B, steps), 8)
    block_b = max(8, _round_up(block_b, 8))
    B_pad = _round_up(B, block_b)

    x = x.astype(jnp.float32)
    x_p = x if B_pad == B else jnp.pad(x, ((0, B_pad - B), (0, 0)))

    grid = (B_pad // block_b,)

    # Weights/biases never change across grid steps -> single buffer.
    resident = pl.Buffered(1)
    in_specs = [
        pl.BlockSpec((block_b, F), lambda i: (i, 0)),                         # x
        pl.BlockSpec((F, U_p), lambda i: (0, 0), pipeline_mode=resident),     # w_in
        pl.BlockSpec((1, U_p), lambda i: (0, 0), pipeline_mode=resident),     # b_in
        pl.BlockSpec((L, U_p, U_p), lambda i: (0, 0, 0), pipeline_mode=resident),  # w_h
        pl.BlockSpec((L, 1, U_p), lambda i: (0, 0, 0), pipeline_mode=resident),    # b_h
        pl.BlockSpec((U_p, O_p), lambda i: (0, 0), pipeline_mode=resident),   # w_out
        pl.BlockSpec((1, O_p), lambda i: (0, 0), pipeline_mode=resident),     # b_out
    ]
    out_specs = pl.BlockSpec((block_b, O_p), lambda i: (i, 0))

    # ---- VMEM budget --------------------------------------------------------
    weight_bytes = (w_in.size + w_h.size + w_out.size) * 2   # bf16, 1 buffer
    bias_bytes = (b_in.size + b_h.size + b_out.size) * 4     # f32,  1 buffer
    x_bytes = 2 * block_b * F * 4                            # double-buffered
    out_bytes = 2 * block_b * O_p * 4                        # double-buffered
    act_bytes = 6 * block_b * U_p * 4                        # live h (f32+bf16), headroom
    footprint = weight_bytes + bias_bytes + x_bytes + out_bytes + act_bytes
    vmem_limit = int(min(max(int(footprint * 1.5), 4 * 1024 * 1024),
                         64 * 1024 * 1024))                  # 64 MiB = v7x physical

    cost = pl.CostEstimate(
        flops=2 * B_pad * (F * U_p + L * U_p * U_p + U_p * O_p),
        transcendentals=0,
        # Weights counted once: they are grid-invariant (single-buffered).
        bytes_accessed=int(x_p.size) * 4 + B_pad * O_p * 4
                       + int(weight_bytes) + int(bias_bytes),
    )

    out_padded = pl.pallas_call(
        _anniris_kernel,
        out_shape=jax.ShapeDtypeStruct((B_pad, O_p), jnp.float32),
        grid=grid,
        in_specs=in_specs,
        out_specs=out_specs,
        compiler_params=pltpu.CompilerParams(
            dimension_semantics=("parallel",),
            vmem_limit_bytes=vmem_limit),
        cost_estimate=cost,
    )(x_p, w_in, b_in, w_h, b_h, w_out, b_out)

    # A fused downstream consumer could take the padded (B_pad, O_p) block
    # directly and skip this re-slice (saves one extra HBM pass for large B).
    if B_pad == B and O_p == O:
        return out_padded
    return out_padded[:B, :O]


def init_params(key, number_units, number_layers):
    """Deterministic synthetic init matching the PyTorch module's shapes.

    PyTorch nn.Linear(in, out) stores weight (out, in); we build weights
    directly in (in, out) layout (already transposed) and biases as (1, out).
    """
    ks = jax.random.split(key, 6)
    U, L = number_units, number_layers

    def uni(k, shape, fan_in):
        bound = 1.0 / jnp.sqrt(fan_in)
        return jax.random.uniform(k, shape, jnp.float32, -bound, bound)

    return {
        "w_in": uni(ks[0], (4, U), 4),
        "b_in": uni(ks[1], (1, U), 4),
        "w_h": uni(ks[2], (L, U, U), U),
        "b_h": uni(ks[3], (L, 1, U), U),
        "w_out": uni(ks[4], (U, 3), U),
        "b_out": uni(ks[5], (1, 3), U),
    }


def anniris_reference(x, params):
    h = jnp.maximum(x @ params["w_in"] + params["b_in"], 0.0)
    for i in range(params["w_h"].shape[0]):
        h = jnp.maximum(h @ params["w_h"][i] + params["b_h"][i], 0.0)
    return h @ params["w_out"] + params["b_out"]


if __name__ == "__main__":
    number_units = 32
    number_layers = 2
    batch = 16

    key = jax.random.PRNGKey(0)
    k_x, k_p = jax.random.split(key)

    x = jax.random.normal(k_x, (batch, 4), jnp.float32)
    params = init_params(k_p, number_units, number_layers)
    prepared = prepare_params(params)          # one-time padding + bf16 cast

    out = jax.block_until_ready(anniris_forward(x, prepared))
    ref = anniris_reference(x, params)
    assert out.shape == (batch, 3)
    assert out.dtype == jnp.float32
    # bf16 MXU operands -> looser tolerance than the pure-f32 version.
    assert jnp.allclose(out, ref, atol=5e-2, rtol=5e-2)

    # Odd, larger batch: exercises padding + the even-step parallel grid (2x520).
    x2 = jax.random.normal(k_x, (1030, 4), jnp.float32)
    out2 = jax.block_until_ready(anniris_forward(x2, prepared))
    ref2 = anniris_reference(x2, params)
    assert out2.shape == (1030, 3)
    assert jnp.allclose(out2, ref2, atol=5e-2, rtol=5e-2)

    print("KERNEL_OK")
</pallas_src>

<mosaic_0001>
module attributes {stable_mosaic.version = 11 : i64} {
  func.func @_anniris_kernel(%arg0: i32, %arg1: memref<16x4xf32, #tpu.memory_space<vmem>>, %arg2: memref<4x128xbf16, #tpu.memory_space<vmem>>, %arg3: memref<1x128xf32, #tpu.memory_space<vmem>>, %arg4: memref<2x128x128xbf16, #tpu.memory_space<vmem>>, %arg5: memref<2x1x128xf32, #tpu.memory_space<vmem>>, %arg6: memref<128x128xbf16, #tpu.memory_space<vmem>>, %arg7: memref<1x128xf32, #tpu.memory_space<vmem>>, %arg8: memref<16x128xf32, #tpu.memory_space<vmem>>) attributes {dimension_semantics = [#tpu.dimension_semantics<parallel>], iteration_bounds = array<i64: 1>, scalar_prefetch = 0 : i64, scratch_operands = 0 : i64, tpu.core_type = #tpu.core_type<tc>, window_params = [{transform_indices = @transform_0, window_bounds = array<i64: 16, 4>}, {pipeline_mode = #tpu.pipeline_mode<synchronous>, transform_indices = @transform_1, window_bounds = array<i64: 4, 128>}, {pipeline_mode = #tpu.pipeline_mode<synchronous>, transform_indices = @transform_2, window_bounds = array<i64: 1, 128>}, {pipeline_mode = #tpu.pipeline_mode<synchronous>, transform_indices = @transform_3, window_bounds = array<i64: 2, 128, 128>}, {pipeline_mode = #tpu.pipeline_mode<synchronous>, transform_indices = @transform_4, window_bounds = array<i64: 2, 1, 128>}, {pipeline_mode = #tpu.pipeline_mode<synchronous>, transform_indices = @transform_5, window_bounds = array<i64: 128, 128>}, {pipeline_mode = #tpu.pipeline_mode<synchronous>, transform_indices = @transform_6, window_bounds = array<i64: 1, 128>}, {transform_indices = @transform_7, window_bounds = array<i64: 16, 128>}]} {
    %c0 = arith.constant 0 : index
    %c0_0 = arith.constant 0 : index
    %0 = vector.load %arg1[%c0, %c0_0] : memref<16x4xf32, #tpu.memory_space<vmem>>, vector<16x4xf32>
    %1 = arith.truncf %0 : vector<16x4xf32> to vector<16x4xbf16>
    %c0_1 = arith.constant 0 : index
    %c0_2 = arith.constant 0 : index
    %2 = vector.load %arg2[%c0_1, %c0_2] : memref<4x128xbf16, #tpu.memory_space<vmem>>, vector<4x128xbf16>
    %cst = arith.constant dense<0.000000e+00> : vector<16x128xf32>
    %3 = tpu.matmul %1, %2, %cst {dimension_numbers = #tpu.dot_dimension_numbers<[1], [0], [0], [1], [0, 0, 1, 1], [], []>} : vector<16x4xbf16>, vector<4x128xbf16>, vector<16x128xf32> -> vector<16x128xf32>
    %c0_3 = arith.constant 0 : index
    %c0_4 = arith.constant 0 : index
    %4 = vector.load %arg3[%c0_3, %c0_4] : memref<1x128xf32, #tpu.memory_space<vmem>>, vector<1x128xf32>
    %5 = vector.broadcast %4 : vector<1x128xf32> to vector<16x128xf32>
    %6 = arith.addf %3, %5 : vector<16x128xf32>
    %cst_5 = arith.constant 0.000000e+00 : f32
    %7 = vector.broadcast %cst_5 : f32 to vector<16x128xf32>
    %8 = arith.maximumf %6, %7 : vector<16x128xf32>
    %9 = arith.truncf %8 : vector<16x128xf32> to vector<16x128xbf16>
    %c0_6 = arith.constant 0 : index
    %c0_7 = arith.constant 0 : index
    %c0_8 = arith.constant 0 : index
    %10 = vector.load %arg4[%c0_6, %c0_7, %c0_8] : memref<2x128x128xbf16, #tpu.memory_space<vmem>>, vector<1x128x128xbf16>
    %11 = vector.shape_cast %10 : vector<1x128x128xbf16> to vector<128x128xbf16>
    %cst_9 = arith.constant dense<0.000000e+00> : vector<16x128xf32>
    %12 = tpu.matmul %9, %11, %cst_9 {dimension_numbers = #tpu.dot_dimension_numbers<[1], [0], [0], [1], [0, 0, 1, 1], [], []>} : vector<16x128xbf16>, vector<128x128xbf16>, vector<16x128xf32> -> vector<16x128xf32>
    %c0_10 = arith.constant 0 : index
    %c0_11 = arith.constant 0 : index
    %c0_12 = arith.constant 0 : index
    %13 = vector.load %arg5[%c0_10, %c0_11, %c0_12] : memref<2x1x128xf32, #tpu.memory_space<vmem>>, vector<1x1x128xf32>
    %14 = vector.shape_cast %13 : vector<1x1x128xf32> to vector<1x128xf32>
    %15 = vector.broadcast %14 : vector<1x128xf32> to vector<16x128xf32>
    %16 = arith.addf %12, %15 : vector<16x128xf32>
    %cst_13 = arith.constant 0.000000e+00 : f32
    %17 = vector.broadcast %cst_13 : f32 to vector<16x128xf32>
    %18 = arith.maximumf %16, %17 : vector<16x128xf32>
    %19 = arith.truncf %18 : vector<16x128xf32> to vector<16x128xbf16>
    %c1 = arith.constant 1 : index
    %c0_14 = arith.constant 0 : index
    %c0_15 = arith.constant 0 : index
    %20 = vector.load %arg4[%c1, %c0_14, %c0_15] : memref<2x128x128xbf16, #tpu.memory_space<vmem>>, vector<1x128x128xbf16>
    %21 = vector.shape_cast %20 : vector<1x128x128xbf16> to vector<128x128xbf16>
    %cst_16 = arith.constant dense<0.000000e+00> : vector<16x128xf32>
    %22 = tpu.matmul %19, %21, %cst_16 {dimension_numbers = #tpu.dot_dimension_numbers<[1], [0], [0], [1], [0, 0, 1, 1], [], []>} : vector<16x128xbf16>, vector<128x128xbf16>, vector<16x128xf32> -> vector<16x128xf32>
    %c1_17 = arith.constant 1 : index
    %c0_18 = arith.constant 0 : index
    %c0_19 = arith.constant 0 : index
    %23 = vector.load %arg5[%c1_17, %c0_18, %c0_19] : memref<2x1x128xf32, #tpu.memory_space<vmem>>, vector<1x1x128xf32>
    %24 = vector.shape_cast %23 : vector<1x1x128xf32> to vector<1x128xf32>
    %25 = vector.broadcast %24 : vector<1x128xf32> to vector<16x128xf32>
    %26 = arith.addf %22, %25 : vector<16x128xf32>
    %cst_20 = arith.constant 0.000000e+00 : f32
    %27 = vector.broadcast %cst_20 : f32 to vector<16x128xf32>
    %28 = arith.maximumf %26, %27 : vector<16x128xf32>
    %29 = arith.truncf %28 : vector<16x128xf32> to vector<16x128xbf16>
    %c0_21 = arith.constant 0 : index
    %c0_22 = arith.constant 0 : index
    %30 = vector.load %arg6[%c0_21, %c0_22] : memref<128x128xbf16, #tpu.memory_space<vmem>>, vector<128x128xbf16>
    %cst_23 = arith.constant dense<0.000000e+00> : vector<16x128xf32>
    %31 = tpu.matmul %29, %30, %cst_23 {dimension_numbers = #tpu.dot_dimension_numbers<[1], [0], [0], [1], [0, 0, 1, 1], [], []>} : vector<16x128xbf16>, vector<128x128xbf16>, vector<16x128xf32> -> vector<16x128xf32>
    %c0_24 = arith.constant 0 : index
    %c0_25 = arith.constant 0 : index
    %32 = vector.load %arg7[%c0_24, %c0_25] : memref<1x128xf32, #tpu.memory_space<vmem>>, vector<1x128xf32>
    %33 = vector.broadcast %32 : vector<1x128xf32> to vector<16x128xf32>
    %34 = arith.addf %31, %33 : vector<16x128xf32>
    %c0_26 = arith.constant 0 : index
    %c0_27 = arith.constant 0 : index
    %35 = vector.load %arg8[%c0_26, %c0_27] : memref<16x128xf32, #tpu.memory_space<vmem>>, vector<16x128xf32>
    tpu.vector_store %arg8[%c0_26, %c0_27], %34 {strides = array<i32>} : memref<16x128xf32, #tpu.memory_space<vmem>>, vector<16x128xf32>,
    return
  }
  func.func @transform_0(%arg0: i32) -> (i32, i32) {
    %c0_i32 = arith.constant 0 : i32
    %c0_i32_0 = arith.constant 0 : i32
    return %arg0, %c0_i32 : i32, i32
  }
  func.func @transform_1(%arg0: i32) -> (i32, i32) {
    %c0_i32 = arith.constant 0 : i32
    %c0_i32_0 = arith.constant 0 : i32
    %c0_i32_1 = arith.constant 0 : i32
    return %c0_i32, %c0_i32_0 : i32, i32
  }
  func.func @transform_2(%arg0: i32) -> (i32, i32) {
    %c0_i32 = arith.constant 0 : i32
    %c0_i32_0 = arith.constant 0 : i32
    %c0_i32_1 = arith.constant 0 : i32
    return %c0_i32, %c0_i32_0 : i32, i32
  }
  func.func @transform_3(%arg0: i32) -> (i32, i32, i32) {
    %c0_i32 = arith.constant 0 : i32
    %c0_i32_0 = arith.constant 0 : i32
    %c0_i32_1 = arith.constant 0 : i32
    %c0_i32_2 = arith.constant 0 : i32
    return %c0_i32, %c0_i32_0, %c0_i32_1 : i32, i32, i32
  }
  func.func @transform_4(%arg0: i32) -> (i32, i32, i32) {
    %c0_i32 = arith.constant 0 : i32
    %c0_i32_0 = arith.constant 0 : i32
    %c0_i32_1 = arith.constant 0 : i32
    %c0_i32_2 = arith.constant 0 : i32
    return %c0_i32, %c0_i32_0, %c0_i32_1 : i32, i32, i32
  }
  func.func @transform_5(%arg0: i32) -> (i32, i32) {
    %c0_i32 = arith.constant 0 : i32
    %c0_i32_0 = arith.constant 0 : i32
    %c0_i32_1 = arith.constant 0 : i32
    return %c0_i32, %c0_i32_0 : i32, i32
  }
  func.func @transform_6(%arg0: i32) -> (i32, i32) {
    %c0_i32 = arith.constant 0 : i32
    %c0_i32_0 = arith.constant 0 : i32
    %c0_i32_1 = arith.constant 0 : i32
    return %c0_i32, %c0_i32_0 : i32, i32
  }
  func.func @transform_7(%arg0: i32) -> (i32, i32) {
    %c0_i32 = arith.constant 0 : i32
    %c0_i32_0 = arith.constant 0 : i32
    return %arg0, %c0_i32 : i32, i32
  }
}

</mosaic_0001>

<llo_original>
// kernel: tpu_custom_call.1
$region0: #{tpu_custom_call.1}
  #allocation0 [shape = 'u32[]', space=smem, size = 0x4, offset = 0x4, fixed_abs, tag = 'smem constant byte address 0x4 - core index']
  #allocation1 [shape = 'u32[144,128]{1,0:T(1,128)}', space=vmem, size = 0x12000, scoped, tag = 'internal scratch']
  %s0 = inlined_call_operand.vmem [shape: f32[16,4], index: 0, kind: input, shape index: {}]
  %s1 = inlined_call_operand.vmem [shape: bf16[4,128], index: 1, kind: input, shape index: {}]
  %s2 = inlined_call_operand.vmem [shape: f32[1,128], index: 2, kind: input, shape index: {}]
  %s3 = inlined_call_operand.hbm [shape: bf16[2,128,128], index: 3, kind: input, shape index: {}]
  %s4 = inlined_call_operand.vmem [shape: f32[2,1,128], index: 4, kind: input, shape index: {}]
  %s5 = inlined_call_operand.hbm [shape: bf16[128,128], index: 5, kind: input, shape index: {}]
  %s6 = inlined_call_operand.vmem [shape: f32[1,128], index: 6, kind: input, shape index: {}]
  %s7 = inlined_call_operand.hbm [shape: f32[16,128], index: 7, kind: output, shape index: {}]
  %s8 = sld [smem:[#allocation0]]
  $region46: #{tpu_custom_call.1} parent=0
    _
  %s10 = ssub.s32 1, %s8
  %s11 = scalar_select 0, %s10, %s8
  $region1: #{tpu_custom_call.1} parent=0
    #allocation2 [shape = 'u8[65536]{0}', space=vmem, size = 0x10000, scoped, tag = 'input window, operand 3, single buffered']
    #allocation3 [shape = 's32[1]{0}', space=sflag, size = 0x4, scoped, tag = 'scoped memory for tpu_custom_call.1']
    #allocation4 [shape = 's32[1]{0}', space=sflag, size = 0x4, scoped, tag = 'scoped memory for tpu_custom_call.1']
    #allocation5 [shape = 'u8[32768]{0}', space=vmem, size = 0x8000, scoped, tag = 'input window, operand 5, single buffered']
    #allocation6 [shape = 's32[1]{0}', space=sflag, size = 0x4, scoped, tag = 'scoped memory for tpu_custom_call.1']
    #allocation7 [shape = 'u8[8192]{0}', space=vmem, size = 0x2000, scoped, tag = 'output window, operand 0, single buffered']
    %12 = vsyncpa [#allocation3], 0
    %13 = vsyncpa [#allocation6], 0
    %14 = vsyncpa [#allocation4], 0
    // Predicated region
    $region2: #{tpu_custom_call.1} parent=1 // pred_check
      _
    $region3: #{tpu_custom_call.1} parent=1 // pred_check_branch
      %16 = sbr.rel (0) target = $region5
    $region4: #{tpu_custom_call.1} parent=1 // pred_region
      _
    $region5: #{tpu_custom_call.1} parent=1 // pred_fallthru
      _
    // Predicated region
    $region6: #{tpu_custom_call.1} parent=1 // pred_check
      _
    $region7: #{tpu_custom_call.1} parent=1 // pred_check_branch
      %18 = sbr.rel (0) target = $region9
    $region8: #{tpu_custom_call.1} parent=1 // pred_region
      _
    $region9: #{tpu_custom_call.1} parent=1 // pred_fallthru
      _
    // Predicated region
    $region10: #{tpu_custom_call.1} parent=1 // pred_check
      _
    $region11: #{tpu_custom_call.1} parent=1 // pred_check_branch
      %20 = sbr.rel (0) target = $region13
    $region12: #{tpu_custom_call.1} parent=1 // pred_region
      _
    $region13: #{tpu_custom_call.1} parent=1 // pred_fallthru
      _
    // Predicated region
    $region14: #{tpu_custom_call.1} parent=1 // pred_check
      _
    $region15: #{tpu_custom_call.1} parent=1 // pred_check_branch
      %22 = sbr.rel (0) target = $region17
    $region16: #{tpu_custom_call.1} parent=1 // pred_region
      %s24 = ssub.s32 2048, 2048
      %25 = vsyncadd [#allocation3], %s24
      %s26 = sshll.u32 [#allocation2], 4
      %s27 = int_to_ptr.vmem [resolvable:$true] %s26
      %32 = dma.hbm_to_vmem [thread:$0]  %s3, 2048, %s27, [#allocation3], 64, 64, 4
    $region17: #{tpu_custom_call.1} parent=1 // pred_fallthru
      _
    // Predicated region
    $region18: #{tpu_custom_call.1} parent=1 // pred_check
      _
    $region19: #{tpu_custom_call.1} parent=1 // pred_check_branch
      %34 = sbr.rel (0) target = $region21
    $region20: #{tpu_custom_call.1} parent=1 // pred_region
      _
    $region21: #{tpu_custom_call.1} parent=1 // pred_fallthru
      _
    // Predicated region
    $region22: #{tpu_custom_call.1} parent=1 // pred_check
      _
    $region23: #{tpu_custom_call.1} parent=1 // pred_check_branch
      %36 = sbr.rel (0) target = $region25
    $region24: #{tpu_custom_call.1} parent=1 // pred_region
      %s38 = ssub.s32 1024, 1024
      %39 = vsyncadd [#allocation6], %s38
      %s40 = sshll.u32 [#allocation5], 4
      %s41 = int_to_ptr.vmem [resolvable:$true] %s40
      %46 = dma.hbm_to_vmem [thread:$0]  %s5, 1024, %s41, [#allocation6], 64, 64, 4
    $region25: #{tpu_custom_call.1} parent=1 // pred_fallthru
      _
    // Predicated region
    $region26: #{tpu_custom_call.1} parent=1 // pred_check
      _
    $region27: #{tpu_custom_call.1} parent=1 // pred_check_branch
      %48 = sbr.rel (0) target = $region29
    $region28: #{tpu_custom_call.1} parent=1 // pred_region
      _
    $region29: #{tpu_custom_call.1} parent=1 // pred_fallthru
      _
    // Predicated region
    $region30: #{tpu_custom_call.1} parent=1 // pred_check
      _
    $region31: #{tpu_custom_call.1} parent=1 // pred_check_branch
      %50 = sbr.rel (0) target = $region33
    $region32: #{tpu_custom_call.1} parent=1 // pred_region
      %51 = dma.done [#allocation3], 2048
    $region33: #{tpu_custom_call.1} parent=1 // pred_fallthru
      _
    // Predicated region
    $region34: #{tpu_custom_call.1} parent=1 // pred_check
      _
    $region35: #{tpu_custom_call.1} parent=1 // pred_check_branch
      %53 = sbr.rel (0) target = $region37
    $region36: #{tpu_custom_call.1} parent=1 // pred_region
      %54 = dma.done [#allocation6], 1024
    $region37: #{tpu_custom_call.1} parent=1 // pred_fallthru
      _
    %v56 = vld [vmem:[%s0] sm:$0xff]
    %v57 = vld [vmem:[%s0 + $0x8] sm:$0xff]
    %v58 = vpack.c.bf16 %v57, %v56
    %v59 = vld [vmem:[%s1] sm:$0x3]
    %v60 = vld [vmem:[%s2] sm:$0x1]
    %v62 = vlaneseq
    %v63 = vshrl.u32 %v62, 7
    %v64 = vsub.s32 0, %v63
    %v65 = vrot.slane %v60, %v64
    %vm67 = vcmask 31744
    %v69 = vsel %vm67, %v58, 0
    %vm71 = vcmask 1041408
    %v73 = vsel %vm71, %v59, 0
    %75 = vmatprep.subr.bf16.mxu0 0
    %76 = vmatpush1.bf16.msra.mxu0 %v73
    %77 = vmatprep.subr.bf16.mxu0 0
    %78 = vmatpush1.bf16.msra.mxu0 0
    %79 = vmatprep.subr.bf16.mxu0 0
    %80 = vmatpush1.bf16.msra.mxu0 0
    %81 = vmatprep.subr.bf16.mxu0 0
    %82 = vmatpush1.bf16.msra.mxu0 0
    %83 = vmatprep.subr.bf16.mxu0 0
    %84 = vmatpush1.bf16.msra.mxu0 0
    %85 = vmatprep.subr.bf16.mxu0 0
    %86 = vmatpush1.bf16.msra.mxu0 0
    %87 = vmatprep.subr.bf16.mxu0 0
    %88 = vmatpush1.bf16.msra.mxu0 0
    %89 = vmatprep.subr.bf16.mxu0 0
    %90 = vmatpush1.bf16.msra.mxu0 0
    %91 = vmatprep.subr.bf16.mxu0 0
    %92 = vmatpush1.bf16.msra.mxu0 0
    %93 = vmatprep.subr.bf16.mxu0 0
    %94 = vmatpush1.bf16.msra.mxu0 0
    %95 = vmatprep.subr.bf16.mxu0 0
    %96 = vmatpush1.bf16.msra.mxu0 0
    %97 = vmatprep.subr.bf16.mxu0 0
    %98 = vmatpush1.bf16.msra.mxu0 0
    %99 = vmatprep.subr.bf16.mxu0 0
    %100 = vmatpush1.bf16.msra.mxu0 0
    %101 = vmatprep.subr.bf16.mxu0 0
    %102 = vmatpush1.bf16.msra.mxu0 0
    %103 = vmatprep.subr.bf16.mxu0 0
    %104 = vmatpush1.bf16.msra.mxu0 0
    %105 = vmatprep.subr.bf16.mxu0 0
    %106 = vmatpush1.bf16.msra.mxu0 0
    %107 = vmatprep.mubr.bf16.mxu0 0
    %108 = vmatmul.mubr.bf16.gmra.mrb[0].mxu0 %v69
    %v109 = vpop.f32.mrb[0].mxu0
    %v110 = vadd.f32 %v65, %v109
    %v111 = vpop.f32.mrb[0].mxu0
    %v112 = vpop.f32.mrb[0].mxu0
    %v113 = vadd.f32 %v65, %v112
    %v114 = vpop.f32.mrb[0].mxu0
    %115 = vdwg.mxu0
    %v116 = vmax.f32 %v110, 0.0
    %v117 = vmax.f32 %v113, 0.0
    %v118 = vpack.c.bf16 %v117, %v116
    %v119 = vld [vmem:[#allocation2] sm:$0xf]
    %v120 = vld [vmem:[#allocation2 + $0x4] sm:$0xf]
    %v121 = vld [vmem:[#allocation2 + $0x8] sm:$0xf]
    %v122 = vld [vmem:[#allocation2 + $0xc] sm:$0xf]
    %v123 = vld [vmem:[#allocation2 + $0x10] sm:$0xf]
    %v124 = vld [vmem:[#allocation2 + $0x14] sm:$0xf]
    %v125 = vld [vmem:[#allocation2 + $0x18] sm:$0xf]
    %v126 = vld [vmem:[#allocation2 + $0x1c] sm:$0xf]
    %v127 = vld [vmem:[#allocation2 + $0x20] sm:$0xf]
    %v128 = vld [vmem:[#allocation2 + $0x24] sm:$0xf]
    %v129 = vld [vmem:[#allocation2 + $0x28] sm:$0xf]
    %v130 = vld [vmem:[#allocation2 + $0x2c] sm:$0xf]
    %v131 = vld [vmem:[#allocation2 + $0x30] sm:$0xf]
    %v132 = vld [vmem:[#allocation2 + $0x34] sm:$0xf]
    %v133 = vld [vmem:[#allocation2 + $0x38] sm:$0xf]
    %v134 = vld [vmem:[#allocation2 + $0x3c] sm:$0xf]
    %v135 = vld [vmem:[%s4] sm:$0x1]
    %v137 = vlaneseq
    %v138 = vshrl.u32 %v137, 7
    %v139 = vsub.s32 0, %v138
    %v140 = vrot.slane %v135, %v139
    %v158 = vunpack.c.l.b16 %v119
    %v159 = vunpack.c.l.b16 %v120
    %v160 = vunpack.c.l.b16 %v121
    %v161 = vunpack.c.l.b16 %v122
    %v162 = vunpack.c.l.b16 %v123
    %v163 = vunpack.c.l.b16 %v124
    %v164 = vunpack.c.l.b16 %v125
    %v165 = vunpack.c.l.b16 %v126
    %v166 = vunpack.c.l.b16 %v127
    %v167 = vunpack.c.l.b16 %v128
    %v168 = vunpack.c.l.b16 %v129
    %v169 = vunpack.c.l.b16 %v130
    %v170 = vunpack.c.l.b16 %v131
    %v171 = vunpack.c.l.b16 %v132
    %v172 = vunpack.c.l.b16 %v133
    %v173 = vunpack.c.l.b16 %v134
    %v174 = vpack.c.b16 %v159, %v158
    %v175 = vpack.c.b16 %v161, %v160
    %v176 = vpack.c.b16 %v163, %v162
    %v177 = vpack.c.b16 %v165, %v164
    %v178 = vpack.c.b16 %v167, %v166
    %v179 = vpack.c.b16 %v169, %v168
    %v180 = vpack.c.b16 %v171, %v170
    %v181 = vpack.c.b16 %v173, %v172
    %190 = vmatprep.subr.bf16.mxu0 0
    %191 = vmatpush1.bf16.msra.mxu0 %v174
    %192 = vmatprep.subr.bf16.mxu0 0
    %193 = vmatpush1.bf16.msra.mxu0 %v175
    %194 = vmatprep.subr.bf16.mxu0 0
    %195 = vmatpush1.bf16.msra.mxu0 %v176
    %196 = vmatprep.subr.bf16.mxu0 0
    %197 = vmatpush1.bf16.msra.mxu0 %v177
    %198 = vmatprep.subr.bf16.mxu0 0
    %199 = vmatpush1.bf16.msra.mxu0 %v178
    %200 = vmatprep.subr.bf16.mxu0 0
    %201 = vmatpush1.bf16.msra.mxu0 %v179
    %202 = vmatprep.subr.bf16.mxu0 0
    %203 = vmatpush1.bf16.msra.mxu0 %v180
    %204 = vmatprep.subr.bf16.mxu0 0
    %205 = vmatpush1.bf16.msra.mxu0 %v181
    %206 = vmatprep.subr.bf16.mxu0 0
    %207 = vmatpush1.bf16.msra.mxu0 0
    %208 = vmatprep.subr.bf16.mxu0 0
    %209 = vmatpush1.bf16.msra.mxu0 0
    %210 = vmatprep.subr.bf16.mxu0 0
    %211 = vmatpush1.bf16.msra.mxu0 0
    %212 = vmatprep.subr.bf16.mxu0 0
    %213 = vmatpush1.bf16.msra.mxu0 0
    %214 = vmatprep.subr.bf16.mxu0 0
    %215 = vmatpush1.bf16.msra.mxu0 0
    %216 = vmatprep.subr.bf16.mxu0 0
    %217 = vmatpush1.bf16.msra.mxu0 0
    %218 = vmatprep.subr.bf16.mxu0 0
    %219 = vmatpush1.bf16.msra.mxu0 0
    %220 = vmatprep.subr.bf16.mxu0 0
    %221 = vmatpush1.bf16.msra.mxu0 0
    %222 = vmatprep.mubr.bf16.mxu0 0
    %223 = vmatmul.mubr.bf16.gmra.mrb[0].mxu0 %v118
    %v224 = vpop.f32.mrb[0].mxu0
    %v225 = vadd.f32 %v140, %v224
    %v226 = vpop.f32.mrb[0].mxu0
    %v227 = vpop.f32.mrb[0].mxu0
    %v228 = vadd.f32 %v140, %v227
    %v229 = vpop.f32.mrb[0].mxu0
    %230 = vdwg.mxu0
    %v231 = vmax.f32 %v225, 0.0
    %v232 = vmax.f32 %v228, 0.0
    %v233 = vpack.c.bf16 %v232, %v231
    %s234 = scalar_lea.vmem [#allocation2], 64
    %v235 = vld [vmem:[%s234] sm:$0xf]
    %v236 = vld [vmem:[%s234 + $0x4] sm:$0xf]
    %v237 = vld [vmem:[%s234 + $0x8] sm:$0xf]
    %v238 = vld [vmem:[%s234 + $0xc] sm:$0xf]
    %v239 = vld [vmem:[%s234 + $0x10] sm:$0xf]
    %v240 = vld [vmem:[%s234 + $0x14] sm:$0xf]
    %v241 = vld [vmem:[%s234 + $0x18] sm:$0xf]
    %v242 = vld [vmem:[%s234 + $0x1c] sm:$0xf]
    %v243 = vld [vmem:[%s234 + $0x20] sm:$0xf]
    %v244 = vld [vmem:[%s234 + $0x24] sm:$0xf]
    %v245 = vld [vmem:[%s234 + $0x28] sm:$0xf]
    %v246 = vld [vmem:[%s234 + $0x2c] sm:$0xf]
    %v247 = vld [vmem:[%s234 + $0x30] sm:$0xf]
    %v248 = vld [vmem:[%s234 + $0x34] sm:$0xf]
    %v249 = vld [vmem:[%s234 + $0x38] sm:$0xf]
    %v250 = vld [vmem:[%s234 + $0x3c] sm:$0xf]
    %s251 = scalar_lea.vmem %s4, 1
    %v252 = vld [vmem:[%s251] sm:$0x1]
    %v254 = vlaneseq
    %v255 = vshrl.u32 %v254, 7
    %v256 = vsub.s32 0, %v255
    %v257 = vrot.slane %v252, %v256
    %v275 = vunpack.c.l.b16 %v235
    %v276 = vunpack.c.l.b16 %v236
    %v277 = vunpack.c.l.b16 %v237
    %v278 = vunpack.c.l.b16 %v238
    %v279 = vunpack.c.l.b16 %v239
    %v280 = vunpack.c.l.b16 %v240
    %v281 = vunpack.c.l.b16 %v241
    %v282 = vunpack.c.l.b16 %v242
    %v283 = vunpack.c.l.b16 %v243
    %v284 = vunpack.c.l.b16 %v244
    %v285 = vunpack.c.l.b16 %v245
    %v286 = vunpack.c.l.b16 %v246
    %v287 = vunpack.c.l.b16 %v247
    %v288 = vunpack.c.l.b16 %v248
    %v289 = vunpack.c.l.b16 %v249
    %v290 = vunpack.c.l.b16 %v250
    %v291 = vpack.c.b16 %v276, %v275
    %v292 = vpack.c.b16 %v278, %v277
    %v293 = vpack.c.b16 %v280, %v279
    %v294 = vpack.c.b16 %v282, %v281
    %v295 = vpack.c.b16 %v284, %v283
    %v296 = vpack.c.b16 %v286, %v285
    %v297 = vpack.c.b16 %v288, %v287
    %v298 = vpack.c.b16 %v290, %v289
    %307 = vmatprep.subr.bf16.mxu0 0
    %308 = vmatpush1.bf16.msra.mxu0 %v291
    %309 = vmatprep.subr.bf16.mxu0 0
    %310 = vmatpush1.bf16.msra.mxu0 %v292
    %311 = vmatprep.subr.bf16.mxu0 0
    %312 = vmatpush1.bf16.msra.mxu0 %v293
    %313 = vmatprep.subr.bf16.mxu0 0
    %314 = vmatpush1.bf16.msra.mxu0 %v294
    %315 = vmatprep.subr.bf16.mxu0 0
    %316 = vmatpush1.bf16.msra.mxu0 %v295
    %317 = vmatprep.subr.bf16.mxu0 0
    %318 = vmatpush1.bf16.msra.mxu0 %v296
    %319 = vmatprep.subr.bf16.mxu0 0
    %320 = vmatpush1.bf16.msra.mxu0 %v297
    %321 = vmatprep.subr.bf16.mxu0 0
    %322 = vmatpush1.bf16.msra.mxu0 %v298
    %323 = vmatprep.subr.bf16.mxu0 0
    %324 = vmatpush1.bf16.msra.mxu0 0
    %325 = vmatprep.subr.bf16.mxu0 0
    %326 = vmatpush1.bf16.msra.mxu0 0
    %327 = vmatprep.subr.bf16.mxu0 0
    %328 = vmatpush1.bf16.msra.mxu0 0
    %329 = vmatprep.subr.bf16.mxu0 0
    %330 = vmatpush1.bf16.msra.mxu0 0
    %331 = vmatprep.subr.bf16.mxu0 0
    %332 = vmatpush1.bf16.msra.mxu0 0
    %333 = vmatprep.subr.bf16.mxu0 0
    %334 = vmatpush1.bf16.msra.mxu0 0
    %335 = vmatprep.subr.bf16.mxu0 0
    %336 = vmatpush1.bf16.msra.mxu0 0
    %337 = vmatprep.subr.bf16.mxu0 0
    %338 = vmatpush1.bf16.msra.mxu0 0
    %339 = vmatprep.mubr.bf16.mxu0 0
    %340 = vmatmul.mubr.bf16.gmra.mrb[0].mxu0 %v233
    %v341 = vpop.f32.mrb[0].mxu0
    %v342 = vadd.f32 %v257, %v341
    %v343 = vpop.f32.mrb[0].mxu0
    %v344 = vpop.f32.mrb[0].mxu0
    %v345 = vadd.f32 %v257, %v344
    %v346 = vpop.f32.mrb[0].mxu0
    %347 = vdwg.mxu0
    %v348 = vmax.f32 %v342, 0.0
    %v349 = vmax.f32 %v345, 0.0
    %v350 = vpack.c.bf16 %v349, %v348
    %v351 = vld [vmem:[#allocation5] sm:$0xf]
    %v352 = vld [vmem:[#allocation5 + $0x4] sm:$0xf]
    %v353 = vld [vmem:[#allocation5 + $0x8] sm:$0xf]
    %v354 = vld [vmem:[#allocation5 + $0xc] sm:$0xf]
    %v355 = vld [vmem:[#allocation5 + $0x10] sm:$0xf]
    %v356 = vld [vmem:[#allocation5 + $0x14] sm:$0xf]
    %v357 = vld [vmem:[#allocation5 + $0x18] sm:$0xf]
    %v358 = vld [vmem:[#allocation5 + $0x1c] sm:$0xf]
    %v359 = vld [vmem:[#allocation5 + $0x20] sm:$0xf]
    %v360 = vld [vmem:[#allocation5 + $0x24] sm:$0xf]
    %v361 = vld [vmem:[#allocation5 + $0x28] sm:$0xf]
    %v362 = vld [vmem:[#allocation5 + $0x2c] sm:$0xf]
    %v363 = vld [vmem:[#allocation5 + $0x30] sm:$0xf]
    %v364 = vld [vmem:[#allocation5 + $0x34] sm:$0xf]
    %v365 = vld [vmem:[#allocation5 + $0x38] sm:$0xf]
    %v366 = vld [vmem:[#allocation5 + $0x3c] sm:$0xf]
    %v367 = vld [vmem:[%s6] sm:$0x1]
    %v369 = vlaneseq
    %v370 = vshrl.u32 %v369, 7
    %v371 = vsub.s32 0, %v370
    %v372 = vrot.slane %v367, %v371
    %v390 = vunpack.c.l.b16 %v351
    %v391 = vunpack.c.l.b16 %v352
    %v392 = vunpack.c.l.b16 %v353
    %v393 = vunpack.c.l.b16 %v354
    %v394 = vunpack.c.l.b16 %v355
    %v395 = vunpack.c.l.b16 %v356
    %v396 = vunpack.c.l.b16 %v357
    %v397 = vunpack.c.l.b16 %v358
    %v398 = vunpack.c.l.b16 %v359
    %v399 = vunpack.c.l.b16 %v360
    %v400 = vunpack.c.l.b16 %v361
    %v401 = vunpack.c.l.b16 %v362
    %v402 = vunpack.c.l.b16 %v363
    %v403 = vunpack.c.l.b16 %v364
    %v404 = vunpack.c.l.b16 %v365
    %v405 = vunpack.c.l.b16 %v366
    %v406 = vpack.c.b16 %v391, %v390
    %v407 = vpack.c.b16 %v393, %v392
    %v408 = vpack.c.b16 %v395, %v394
    %v409 = vpack.c.b16 %v397, %v396
    %v410 = vpack.c.b16 %v399, %v398
    %v411 = vpack.c.b16 %v401, %v400
    %v412 = vpack.c.b16 %v403, %v402
    %v413 = vpack.c.b16 %v405, %v404
    %422 = vmatprep.subr.bf16.mxu0 0
    %423 = vmatpush1.bf16.msra.mxu0 %v406
    %424 = vmatprep.subr.bf16.mxu0 0
    %425 = vmatpush1.bf16.msra.mxu0 %v407
    %426 = vmatprep.subr.bf16.mxu0 0
    %427 = vmatpush1.bf16.msra.mxu0 %v408
    %428 = vmatprep.subr.bf16.mxu0 0
    %429 = vmatpush1.bf16.msra.mxu0 %v409
    %430 = vmatprep.subr.bf16.mxu0 0
    %431 = vmatpush1.bf16.msra.mxu0 %v410
    %432 = vmatprep.subr.bf16.mxu0 0
    %433 = vmatpush1.bf16.msra.mxu0 %v411
    %434 = vmatprep.subr.bf16.mxu0 0
    %435 = vmatpush1.bf16.msra.mxu0 %v412
    %436 = vmatprep.subr.bf16.mxu0 0
    %437 = vmatpush1.bf16.msra.mxu0 %v413
    %438 = vmatprep.subr.bf16.mxu0 0
    %439 = vmatpush1.bf16.msra.mxu0 0
    %440 = vmatprep.subr.bf16.mxu0 0
    %441 = vmatpush1.bf16.msra.mxu0 0
    %442 = vmatprep.subr.bf16.mxu0 0
    %443 = vmatpush1.bf16.msra.mxu0 0
    %444 = vmatprep.subr.bf16.mxu0 0
    %445 = vmatpush1.bf16.msra.mxu0 0
    %446 = vmatprep.subr.bf16.mxu0 0
    %447 = vmatpush1.bf16.msra.mxu0 0
    %448 = vmatprep.subr.bf16.mxu0 0
    %449 = vmatpush1.bf16.msra.mxu0 0
    %450 = vmatprep.subr.bf16.mxu0 0
    %451 = vmatpush1.bf16.msra.mxu0 0
    %452 = vmatprep.subr.bf16.mxu0 0
    %453 = vmatpush1.bf16.msra.mxu0 0
    %454 = vmatprep.mubr.bf16.mxu0 0
    %455 = vmatmul.mubr.bf16.gmra.mrb[0].mxu0 %v350
    %v456 = vpop.f32.mrb[0].mxu0
    %v457 = vadd.f32 %v372, %v456
    %v458 = vpop.f32.mrb[0].mxu0
    %v459 = vpop.f32.mrb[0].mxu0
    %v460 = vadd.f32 %v372, %v459
    %v461 = vpop.f32.mrb[0].mxu0
    %462 = vdwg.mxu0
    %463 = vst [vmem:[#allocation7] sm:$0xff] %v457
    %464 = vst [vmem:[#allocation7 + $0x8] sm:$0xff] %v460
    // Predicated region
    $region38: #{tpu_custom_call.1} parent=1 // pred_check
      _
    $region39: #{tpu_custom_call.1} parent=1 // pred_check_branch
      %466 = sbr.rel (0) target = $region41
    $region40: #{tpu_custom_call.1} parent=1 // pred_region
      %s468 = ssub.s32 256, 256
      %469 = vsyncadd [#allocation4], %s468
      %s470 = sshll.u32 [#allocation7], 4
      %s471 = int_to_ptr.vmem [resolvable:$true] %s470
      %476 = dma.vmem_to_hbm [thread:$0]  %s471, 256, %s7, [#allocation4], 128, 128, 8
    $region41: #{tpu_custom_call.1} parent=1 // pred_fallthru
      _
    // Predicated region
    $region42: #{tpu_custom_call.1} parent=1 // pred_check
      _
    $region43: #{tpu_custom_call.1} parent=1 // pred_check_branch
      %478 = sbr.rel (0) target = $region45
    $region44: #{tpu_custom_call.1} parent=1 // pred_region
      %479 = dma.done [#allocation4], 256
    $region45: #{tpu_custom_call.1} parent=1 // pred_fallthru
      _
    %480 = vsyncpa [#allocation3], 1
    %481 = vsyncpa [#allocation6], 1
    %482 = vsyncpa [#allocation4], 1

</llo_original>
